<compile_context>
chip_gen: v7x
topology: tpu7x:2x2x1
jax: 0.10.0
libtpu: 0.0.40
codegen_flags: <defaults>
</compile_context>

<pallas_src>
import numpy as np
import jax
import jax.numpy as jnp
from jax.experimental import pallas as pl
from jax.experimental.pallas import tpu as pltpu


def _hbm_copy_kernel(src_ref, dst_ref, sem):
    # Single whole-array HBM->HBM DMA; the embeddings are stored unchanged.
    cp = pltpu.make_async_copy(src_ref, dst_ref, sem)
    cp.start()
    cp.wait()


_COPY_CACHE = {}


def _build_copy(shape, dtype):
    """Build (and cache) the one-DMA copy kernel for a given shape/dtype."""
    key = (tuple(shape), jnp.dtype(dtype).name)
    fn = _COPY_CACHE.get(key)
    if fn is None:
        fn = pl.pallas_call(
            _hbm_copy_kernel,
            out_shape=jax.ShapeDtypeStruct(tuple(shape), dtype),
            # Raw HBM refs on both sides: no auto-tiling, no VMEM staging.
            in_specs=[pl.BlockSpec(memory_space=pl.ANY)],
            out_specs=pl.BlockSpec(memory_space=pl.ANY),
            scratch_shapes=[pltpu.SemaphoreType.DMA],
        )
        _COPY_CACHE[key] = fn
    return fn


def extract_embeddings(embeddings):
    """Device-side part of SaveEmbeddings.forward: materialize the embeddings
    as a fresh HBM buffer via a single DMA (no TensorCore work)."""
    return _build_copy(embeddings.shape, embeddings.dtype)(embeddings)


class SaveEmbeddings:
    """JAX/Pallas re-implementation of the metric module's forward semantics."""

    SAVE_COUNT = 40000

    def __init__(self, engine=None, mode='test', save_embeddings_format='binary'):
        self.currentBatch = 0
        self.mode = mode
        self.allEmbeddings = []
        self.allEmbeddingsBin = []
        self.save_embeddings_format = save_embeddings_format
        # (device_array, batch_meta) whose D2H is in flight; processed on the
        # NEXT forward() (or by flush()) so the PCIe copy overlaps device work.
        self._pending = None
        # TODO(synk): Options() config lookup and engine hook registration are
        # framework plumbing with no Pallas equivalent.

    # -- host-side serialization of one (already transferred) batch ---------
    def _process(self, device_array, batch):
        host = np.asarray(device_array)          # completed (or completes) D2H
        flat = host.reshape(host.shape[0], -1)
        if self.save_embeddings_format == 'complete':
            # mirrors list(lastCellState.unbind()) + per-sample tuple append
            for i in range(flat.shape[0]):
                self.allEmbeddings.append(
                    (batch['sequence'][i], int(batch['index'][i]), host[i]))
        else:
            # mirrors [e.numpy().tobytes() for e in lastCellState.unbind()],
            # but with one bulk tobytes() + offset slicing instead of a
            # per-row Python loop of numpy calls.
            blob = flat.tobytes()
            row_nbytes = flat.shape[1] * flat.itemsize
            self.allEmbeddingsBin += [
                blob[i * row_nbytes:(i + 1) * row_nbytes]
                for i in range(flat.shape[0])
            ]

    def flush(self):
        """Drain the pending batch (call before reading results / saving)."""
        if self._pending is not None:
            device_array, batch = self._pending
            self._pending = None
            self._process(device_array, batch)

    def forward(self, criterionOutput, networkOutput, batch):
        # Mirrors `lastCellState = embeddings.cpu()`: one HBM->HBM DMA on
        # device, then start the device->host transfer immediately.
        last_cell_state = extract_embeddings(networkOutput)
        if hasattr(last_cell_state, "copy_to_host_async"):
            last_cell_state.copy_to_host_async()

        # Double-buffer on host: serialize the PREVIOUS batch while the
        # current batch's D2H is still in flight.
        self.flush()
        self._pending = (last_cell_state, batch)

        self.currentBatch += 1
        if self.currentBatch % SaveEmbeddings.SAVE_COUNT == 0:
            self.flush()
            # TODO(synk): save_embeddings() (pickle / binary file dump) is
            # host file I/O with no Pallas equivalent.
        return last_cell_state


if __name__ == "__main__":
    key = jax.random.PRNGKey(0)
    B, D = 8, 256  # small batch of 8 samples, hidden size 256
    network_output = jax.random.normal(key, (B, D), dtype=jnp.float32)
    ref = np.asarray(network_output)

    batch = {
        'sequence': [f"SEQ_{i}" for i in range(B)],
        'index': np.arange(B, dtype=np.int64),
    }

    metric = SaveEmbeddings(mode='test', save_embeddings_format='binary')
    out = metric.forward(criterionOutput=None, networkOutput=network_output,
                         batch=batch)
    out = jax.block_until_ready(out)
    metric.flush()   # drain the double-buffered host path for verification

    # Correctness: the DMA copy must be an exact pass-through, and the host
    # per-sample byte blobs must round-trip to the original rows.
    assert np.array_equal(np.asarray(out), ref)
    assert len(metric.allEmbeddingsBin) == B
    for i, blob in enumerate(metric.allEmbeddingsBin):
        assert np.array_equal(np.frombuffer(blob, dtype=np.float32), ref[i])

    # Also exercise the 'complete' format path once.
    metric2 = SaveEmbeddings(mode='test', save_embeddings_format='complete')
    out2 = jax.block_until_ready(
        metric2.forward(None, network_output, batch))
    metric2.flush()
    assert len(metric2.allEmbeddings) == B
    assert np.array_equal(metric2.allEmbeddings[3][2], ref[3])

    print("KERNEL_OK")
</pallas_src>

<mosaic_0001>
module attributes {stable_mosaic.version = 11 : i64} {
  func.func @_hbm_copy_kernel(%arg0: memref<8x256xf32, #tpu.memory_space<any>>, %arg1: memref<8x256xf32, #tpu.memory_space<any>>, %arg2: memref<!tpu.dma_semaphore, #tpu.memory_space<semaphore_mem>>) attributes {dimension_semantics = [], scalar_prefetch = 0 : i64, scratch_operands = 1 : i64, tpu.core_type = #tpu.core_type<tc>} {
    tpu.enqueue_dma source(%arg0 : memref<8x256xf32, #tpu.memory_space<any>>) target(%arg1 : memref<8x256xf32, #tpu.memory_space<any>>) target_semaphore(%arg2 : memref<!tpu.dma_semaphore, #tpu.memory_space<semaphore_mem>>)
    tpu.wait_dma2 semaphore(%arg2 : memref<!tpu.dma_semaphore, #tpu.memory_space<semaphore_mem>>) src(%arg0 : memref<8x256xf32, #tpu.memory_space<any>>) dst(%arg1 : memref<8x256xf32, #tpu.memory_space<any>>)
    return
  }
}

</mosaic_0001>

<llo_original>
// kernel: tpu_custom_call.1
$region0: #{tpu_custom_call.1}
  #allocation0 [shape = 'u32[]', space=smem, size = 0x4, offset = 0x4, fixed_abs, tag = 'smem constant byte address 0x4 - core index']
  #allocation1 [shape = 'u32[144,128]{1,0:T(1,128)}', space=vmem, size = 0x12000, scoped, tag = 'internal scratch']
  #allocation2 [shape = 's32[1]{0}', space=sflag, size = 0x4, scoped, tag = 'scratch operand']
  #allocation3 [shape = 's32[]', space=sflag, size = 0x4, offset = 0, fixed_abs, tag = 'sflag constant byte address 0x0 - dummy sync flag']
  #allocation4 [shape = 'u32[0]{0}', space=smem, size = 0, offset = 0, fixed_abs, tag = 'smem constant byte address 0x0 - null']
  %s0 = inlined_call_operand.hbm [shape: f32[8,256], index: 0, kind: input, shape index: {}]
  %s1 = inlined_call_operand.hbm [shape: f32[8,256], index: 1, kind: output, shape index: {}]
  %s2 = sld [smem:[#allocation0]]
  $region2: #{tpu_custom_call.1} parent=0
    _
  %s4 = ssub.s32 1, %s2
  %s5 = scalar_select 0, %s4, %s2
  %s7 = sshll.u32 1, 14
  %s8 = sxor.u32 4294967295, %s7
  %s11 = sshll.u32 3, 24
  %s12 = sxor.u32 4294967295, %s11
  %s13 = sand.u32 0, %s12
  %s15 = sor.u32 %s13, 0
  %18 = dma.general %s0, 256, %s1, [#allocation2], [#allocation3], [#allocation4], %s15, 0
  %s19 = smul.u32 8, 1
  %s20 = smul.u32 %s19, 2
  %s21 = sshll.u32 %s20, 4
  %22 = dma.done [#allocation2], %s21
  %23 = vsyncmov [#allocation2]
  %s24 = vpop.sfrf %23
  %p25 = scmp.eq.s32.totalorder %s24, 0
  %p26 = pneg %p25
  %28 = shalt.err (%p26)

</llo_original>
